<compile_context>
chip_gen: v7x
topology: tpu7x:2x2x1
jax: 0.10.0
libtpu: 0.0.40
codegen_flags: <defaults>
</compile_context>

<pallas_src>
import jax
import jax.numpy as jnp
import numpy as np
from jax.experimental import pallas as pl
from jax.experimental.pallas import tpu as pltpu

LANE = 128
SUBLANE = 8


def _round_up(v, m):
    return ((v + m - 1) // m) * m


def gnn_kernel(a_ref, x_ref, w1_ref, bias_ref, w2_ref, wl_ref, bl_ref, out_ref):
    """One grid step == one graph.

    a_ref   : (n, n)   bf16  sym-normalized (A + I) block for this graph
    x_ref   : (n, FP)  bf16  node features (zero-padded to lane width)
    w1_ref  : (FP, HP) bf16
    bias_ref: (2, HP)  f32   row 0 = b1, row 1 = b2 (fused)
    w2_ref  : (HP, HP) bf16
    wl_ref  : (HP, OP) bf16  head weight, real values in column 0, rest zero
    bl_ref  : (1,)     f32   head bias (SMEM scalar)
    out_ref : (1, OP)  f32   lane-dense output row (column 0 is the prediction)
    """
    a = a_ref[...]

    # --- GCN layer 1: relu(Ahat @ (X @ W1) + b1) ----------------------------
    h = jnp.dot(x_ref[...], w1_ref[...], preferred_element_type=jnp.float32)
    h = jnp.dot(a, h.astype(jnp.bfloat16), preferred_element_type=jnp.float32)
    h = jnp.maximum(h + bias_ref[0:1, :], 0.0)          # f32 bias + ReLU on VPU

    # --- GCN layer 2: Ahat @ (H @ W2) + b2 ----------------------------------
    h = jnp.dot(h.astype(jnp.bfloat16), w2_ref[...], preferred_element_type=jnp.float32)
    h = jnp.dot(a, h.astype(jnp.bfloat16), preferred_element_type=jnp.float32)
    h = h + bias_ref[1:2, :]

    # --- global mean pool: segment mean (this step owns one whole graph) ----
    g = jnp.mean(h, axis=0, keepdims=True)              # (1, HP) f32

    # --- linear head, stored lane-dense (padded to OP columns) --------------
    out = jnp.dot(g.astype(jnp.bfloat16), wl_ref[...], preferred_element_type=jnp.float32)
    out_ref[...] = out + bl_ref[0]


def _build_graph_adjacency_blocks(edge_index, num_graphs, nodes_per_graph):
    """Per-graph dense sym-normalized adjacency blocks [G, n, n] (f32).

    Exploits the block-diagonal structure of the batched graph: no N x N matrix
    is ever materialized.  Assumes equal-sized graphs, contiguous node ids.
    """
    n = nodes_per_graph
    src, dst = edge_index[0], edge_index[1]
    gid = dst // n
    ls = src - gid * n
    ld = dst - gid * n
    adj = jnp.zeros((num_graphs, n, n), jnp.float32).at[gid, ld, ls].add(1.0)
    adj = adj + jnp.eye(n, dtype=jnp.float32)[None, :, :]        # add self-loops
    deg = adj.sum(axis=2)                                        # [G, n]
    dinv = jnp.where(deg > 0, jax.lax.rsqrt(deg), 0.0)
    return dinv[:, :, None] * adj * dinv[:, None, :]             # D^-1/2 (A+I) D^-1/2


def _prepare_operands(x, edge_index, params, num_graphs, nodes_per_graph):
    """Pad to lane-dense shapes, cast MXU operands to bf16, build Ahat blocks."""
    w1, b1, w2, b2, wl, bl = params
    n = nodes_per_graph
    N, f_in = x.shape
    hidden = w1.shape[1]
    assert N == num_graphs * n, "equal-sized contiguous graphs expected"
    assert n % SUBLANE == 0, "nodes per graph must be a multiple of 8 (sublane)"

    fp = _round_up(max(f_in, LANE), LANE)
    hp = _round_up(max(hidden, LANE), LANE)
    op = LANE

    a_blocks = _build_graph_adjacency_blocks(edge_index, num_graphs, n)

    xp = jnp.zeros((N, fp), jnp.float32).at[:, :f_in].set(x)
    w1p = jnp.zeros((fp, hp), jnp.float32).at[:f_in, :hidden].set(w1)
    w2p = jnp.zeros((hp, hp), jnp.float32).at[:hidden, :hidden].set(w2)
    biasp = (jnp.zeros((2, hp), jnp.float32)
             .at[0, :hidden].set(b1[0])
             .at[1, :hidden].set(b2[0]))
    wlp = jnp.zeros((hp, op), jnp.float32).at[:hidden, 0].set(wl[:, 0])
    bl_s = bl.reshape((1,)).astype(jnp.float32)

    ops = (a_blocks.astype(jnp.bfloat16),    # bf16 MXU operands, f32 accumulation
           xp.astype(jnp.bfloat16),
           w1p.astype(jnp.bfloat16),
           biasp,                            # biases stay f32
           w2p.astype(jnp.bfloat16),
           wlp.astype(jnp.bfloat16),
           bl_s)
    dims = (n, fp, hp, op)
    return ops, dims


def gnn_forward(x, edge_index, batch, params, num_graphs, nodes_per_graph):
    del batch  # graph membership is implied by contiguous equal-sized blocks
    (a_b, x_b, w1_b, bias_f, w2_b, wl_b, bl_s), (n, fp, hp, op) = _prepare_operands(
        x, edge_index, params, num_graphs, nodes_per_graph)
    g_ = num_graphs

    flops = g_ * (2 * n * fp * hp + 4 * n * n * hp + 2 * n * hp * hp + 2 * hp * op)
    bytes_accessed = int(2 * (a_b.size + x_b.size + w1_b.size + w2_b.size + wl_b.size)
                         + 4 * (bias_f.size + bl_s.size + g_ * op))

    out = pl.pallas_call(
        gnn_kernel,
        out_shape=jax.ShapeDtypeStruct((g_, 1, op), jnp.float32),
        grid=(g_,),
        in_specs=[
            pl.BlockSpec((None, n, n), lambda g: (g, 0, 0)),    # per-graph Ahat block
            pl.BlockSpec((n, fp), lambda g: (g, 0)),            # this graph's node rows
            pl.BlockSpec((fp, hp), lambda g: (0, 0)),           # W1 (shared)
            pl.BlockSpec((2, hp), lambda g: (0, 0)),            # fused b1/b2 (f32)
            pl.BlockSpec((hp, hp), lambda g: (0, 0)),           # W2 (shared)
            pl.BlockSpec((hp, op), lambda g: (0, 0)),           # head weight (padded)
            pl.BlockSpec(memory_space=pltpu.MemorySpace.SMEM),  # head bias scalar
        ],
        out_specs=pl.BlockSpec((None, 1, op), lambda g: (g, 0, 0)),
        compiler_params=pltpu.CompilerParams(
            dimension_semantics=("parallel",)),                 # graphs across TCs
        cost_estimate=pl.CostEstimate(flops=flops, transcendentals=0,
                                      bytes_accessed=bytes_accessed),
    )(a_b, x_b, w1_b, bias_f, w2_b, wl_b, bl_s)
    return out[:, 0, 0]                                         # .squeeze(-1)


def gnn_reference_bf16(x, edge_index, params, num_graphs, nodes_per_graph):
    """Pure-JAX mirror of the kernel's padded bf16/f32 numerics."""
    (a_b, x_b, w1_b, bias_f, w2_b, wl_b, bl_s), (n, fp, hp, op) = _prepare_operands(
        x, edge_index, params, num_graphs, nodes_per_graph)
    xg = x_b.reshape(num_graphs, n, fp)
    h = jnp.einsum("gnf,fh->gnh", xg, w1_b,
                   preferred_element_type=jnp.float32).astype(jnp.bfloat16)
    h = jnp.einsum("gmn,gnh->gmh", a_b, h, preferred_element_type=jnp.float32)
    h = jnp.maximum(h + bias_f[0][None, None, :], 0.0)
    h = jnp.einsum("gnh,hk->gnk", h.astype(jnp.bfloat16), w2_b,
                   preferred_element_type=jnp.float32).astype(jnp.bfloat16)
    h = jnp.einsum("gmn,gnh->gmh", a_b, h, preferred_element_type=jnp.float32)
    h = h + bias_f[1][None, None, :]
    pooled = h.mean(axis=1)                                     # (G, HP) f32
    out = jnp.dot(pooled.astype(jnp.bfloat16), wl_b,
                  preferred_element_type=jnp.float32) + bl_s[0]
    return out[:, 0]


def gnn_reference_f32(x, edge_index, batch, params, num_graphs):
    """Full-precision dense reference of the original module's forward pass."""
    src, dst = edge_index[0], edge_index[1]
    N = x.shape[0]
    adj = jnp.zeros((N, N), jnp.float32).at[dst, src].add(1.0) + jnp.eye(N)
    deg = adj.sum(axis=1)
    dinv = jnp.where(deg > 0, 1.0 / jnp.sqrt(deg), 0.0)
    a_hat = dinv[:, None] * adj * dinv[None, :]
    w1, b1, w2, b2, wl, bl = params
    h = jnp.maximum(a_hat @ (x @ w1) + b1, 0.0)
    h = a_hat @ (h @ w2) + b2
    onehot = (batch[None, :] == jnp.arange(num_graphs)[:, None]).astype(jnp.float32)
    pool = onehot / jnp.maximum(onehot.sum(axis=1, keepdims=True), 1.0)
    g = pool @ h
    return (g @ wl + bl)[:, 0]


def init_params(key, node_input_dim, hidden_dim):
    ks = jax.random.split(key, 6)
    scale = 0.1
    w1 = scale * jax.random.normal(ks[0], (node_input_dim, hidden_dim), jnp.float32)
    b1 = scale * jax.random.normal(ks[1], (1, hidden_dim), jnp.float32)
    w2 = scale * jax.random.normal(ks[2], (hidden_dim, hidden_dim), jnp.float32)
    b2 = scale * jax.random.normal(ks[3], (1, hidden_dim), jnp.float32)
    wl = scale * jax.random.normal(ks[4], (hidden_dim, 1), jnp.float32)
    bl = scale * jax.random.normal(ks[5], (1, 1), jnp.float32)
    return (w1, b1, w2, b2, wl, bl)


if __name__ == "__main__":
    NODE_INPUT_DIM = 8
    HIDDEN_DIM = 32
    NUM_GRAPHS = 2
    NODES_PER_GRAPH = 8
    N = NUM_GRAPHS * NODES_PER_GRAPH

    key = jax.random.PRNGKey(0)
    k_x, k_p = jax.random.split(key)

    # deterministic node features
    x = jax.random.normal(k_x, (N, NODE_INPUT_DIM), jnp.float32)

    # deterministic edge_index: a bidirectional ring inside each graph
    edges = []
    for g in range(NUM_GRAPHS):
        base = g * NODES_PER_GRAPH
        for i in range(NODES_PER_GRAPH):
            a, b = base + i, base + (i + 1) % NODES_PER_GRAPH
            edges.append((a, b))
            edges.append((b, a))
    edge_index = jnp.array(edges, dtype=jnp.int32).T            # [2, E]

    # batch assignment vector (node -> graph id)
    batch = jnp.repeat(jnp.arange(NUM_GRAPHS, dtype=jnp.int32), NODES_PER_GRAPH)

    params = init_params(k_p, NODE_INPUT_DIM, HIDDEN_DIM)

    out = gnn_forward(x, edge_index, batch, params, NUM_GRAPHS, NODES_PER_GRAPH)
    out = jax.block_until_ready(out)
    assert out.shape == (NUM_GRAPHS,)

    # exact-precision mirror (same bf16/f32 path as the kernel)
    ref_b = gnn_reference_bf16(x, edge_index, params, NUM_GRAPHS, NODES_PER_GRAPH)
    np.testing.assert_allclose(np.asarray(out), np.asarray(ref_b), rtol=1e-3, atol=1e-3)

    # full-f32 semantic reference of the original module
    ref_f = gnn_reference_f32(x, edge_index, batch, params, NUM_GRAPHS)
    np.testing.assert_allclose(np.asarray(out), np.asarray(ref_f), rtol=5e-2, atol=1e-2)

    print("KERNEL_OK")
</pallas_src>

<mosaic_0001>
module attributes {stable_mosaic.version = 11 : i64} {
  func.func @gnn_kernel(%arg0: i32, %arg1: memref<1x8x8xbf16, #tpu.memory_space<vmem>>, %arg2: memref<8x128xbf16, #tpu.memory_space<vmem>>, %arg3: memref<128x128xbf16, #tpu.memory_space<vmem>>, %arg4: memref<2x128xf32, #tpu.memory_space<vmem>>, %arg5: memref<128x128xbf16, #tpu.memory_space<vmem>>, %arg6: memref<128x128xbf16, #tpu.memory_space<vmem>>, %arg7: memref<1xf32, #tpu.memory_space<smem>>, %arg8: memref<1x1x128xf32, #tpu.memory_space<vmem>>) attributes {dimension_semantics = [#tpu.dimension_semantics<parallel>], iteration_bounds = array<i64: 2>, scalar_prefetch = 0 : i64, scratch_operands = 0 : i64, tpu.core_type = #tpu.core_type<tc>, window_params = [{transform_indices = @transform_0, window_bounds = array<i64: 1, 8, 8>}, {transform_indices = @transform_1, window_bounds = array<i64: 8, 128>}, {pipeline_mode = #tpu.pipeline_mode<synchronous>, transform_indices = @transform_2, window_bounds = array<i64: 128, 128>}, {pipeline_mode = #tpu.pipeline_mode<synchronous>, transform_indices = @transform_3, window_bounds = array<i64: 2, 128>}, {pipeline_mode = #tpu.pipeline_mode<synchronous>, transform_indices = @transform_4, window_bounds = array<i64: 128, 128>}, {pipeline_mode = #tpu.pipeline_mode<synchronous>, transform_indices = @transform_5, window_bounds = array<i64: 128, 128>}, {transform_indices = @transform_6, window_bounds = array<i64: 1>}, {transform_indices = @transform_7, window_bounds = array<i64: 1, 1, 128>}]} {
    %c0 = arith.constant 0 : index
    %c0_0 = arith.constant 0 : index
    %c0_1 = arith.constant 0 : index
    %0 = vector.load %arg1[%c0, %c0_0, %c0_1] : memref<1x8x8xbf16, #tpu.memory_space<vmem>>, vector<1x8x8xbf16>
    %1 = vector.shape_cast %0 : vector<1x8x8xbf16> to vector<8x8xbf16>
    %c0_2 = arith.constant 0 : index
    %c0_3 = arith.constant 0 : index
    %2 = vector.load %arg2[%c0_2, %c0_3] : memref<8x128xbf16, #tpu.memory_space<vmem>>, vector<8x128xbf16>
    %c0_4 = arith.constant 0 : index
    %c0_5 = arith.constant 0 : index
    %3 = vector.load %arg3[%c0_4, %c0_5] : memref<128x128xbf16, #tpu.memory_space<vmem>>, vector<128x128xbf16>
    %cst = arith.constant dense<0.000000e+00> : vector<8x128xf32>
    %4 = tpu.matmul %2, %3, %cst {dimension_numbers = #tpu.dot_dimension_numbers<[1], [0], [0], [1], [0, 0, 1, 1], [], []>} : vector<8x128xbf16>, vector<128x128xbf16>, vector<8x128xf32> -> vector<8x128xf32>
    %5 = arith.truncf %4 : vector<8x128xf32> to vector<8x128xbf16>
    %cst_6 = arith.constant dense<0.000000e+00> : vector<8x128xf32>
    %6 = tpu.matmul %1, %5, %cst_6 {dimension_numbers = #tpu.dot_dimension_numbers<[1], [0], [0], [1], [0, 0, 1, 1], [], []>} : vector<8x8xbf16>, vector<8x128xbf16>, vector<8x128xf32> -> vector<8x128xf32>
    %c0_7 = arith.constant 0 : index
    %c0_8 = arith.constant 0 : index
    %7 = vector.load %arg4[%c0_7, %c0_8] : memref<2x128xf32, #tpu.memory_space<vmem>>, vector<1x128xf32>
    %8 = vector.broadcast %7 : vector<1x128xf32> to vector<8x128xf32>
    %9 = arith.addf %6, %8 : vector<8x128xf32>
    %cst_9 = arith.constant 0.000000e+00 : f32
    %10 = vector.broadcast %cst_9 : f32 to vector<8x128xf32>
    %11 = arith.maximumf %9, %10 : vector<8x128xf32>
    %12 = arith.truncf %11 : vector<8x128xf32> to vector<8x128xbf16>
    %c0_10 = arith.constant 0 : index
    %c0_11 = arith.constant 0 : index
    %13 = vector.load %arg5[%c0_10, %c0_11] : memref<128x128xbf16, #tpu.memory_space<vmem>>, vector<128x128xbf16>
    %cst_12 = arith.constant dense<0.000000e+00> : vector<8x128xf32>
    %14 = tpu.matmul %12, %13, %cst_12 {dimension_numbers = #tpu.dot_dimension_numbers<[1], [0], [0], [1], [0, 0, 1, 1], [], []>} : vector<8x128xbf16>, vector<128x128xbf16>, vector<8x128xf32> -> vector<8x128xf32>
    %15 = arith.truncf %14 : vector<8x128xf32> to vector<8x128xbf16>
    %cst_13 = arith.constant dense<0.000000e+00> : vector<8x128xf32>
    %16 = tpu.matmul %1, %15, %cst_13 {dimension_numbers = #tpu.dot_dimension_numbers<[1], [0], [0], [1], [0, 0, 1, 1], [], []>} : vector<8x8xbf16>, vector<8x128xbf16>, vector<8x128xf32> -> vector<8x128xf32>
    %c1 = arith.constant 1 : index
    %c0_14 = arith.constant 0 : index
    %17 = vector.load %arg4[%c1, %c0_14] : memref<2x128xf32, #tpu.memory_space<vmem>>, vector<1x128xf32>
    %18 = vector.broadcast %17 : vector<1x128xf32> to vector<8x128xf32>
    %19 = arith.addf %16, %18 : vector<8x128xf32>
    %cst_15 = arith.constant dense<0.000000e+00> : vector<128xf32>
    %20 = vector.multi_reduction <add>, %19, %cst_15 [0] : vector<8x128xf32> to vector<128xf32>
    %21 = vector.shape_cast %20 : vector<128xf32> to vector<1x128xf32>
    %cst_16 = arith.constant 8.000000e+00 : f32
    %22 = vector.broadcast %cst_16 : f32 to vector<1x128xf32>
    %23 = arith.divf %21, %22 : vector<1x128xf32>
    %24 = arith.truncf %23 : vector<1x128xf32> to vector<1x128xbf16>
    %c0_17 = arith.constant 0 : index
    %c0_18 = arith.constant 0 : index
    %25 = vector.load %arg6[%c0_17, %c0_18] : memref<128x128xbf16, #tpu.memory_space<vmem>>, vector<128x128xbf16>
    %cst_19 = arith.constant dense<0.000000e+00> : vector<1x128xf32>
    %26 = tpu.matmul %24, %25, %cst_19 {dimension_numbers = #tpu.dot_dimension_numbers<[1], [0], [0], [1], [0, 0, 1, 1], [], []>} : vector<1x128xbf16>, vector<128x128xbf16>, vector<1x128xf32> -> vector<1x128xf32>
    %c0_20 = arith.constant 0 : index
    %27 = memref.load %arg7[%c0_20] : memref<1xf32, #tpu.memory_space<smem>>
    %28 = vector.broadcast %27 : f32 to vector<1x128xf32>
    %29 = arith.addf %26, %28 : vector<1x128xf32>
    %c0_21 = arith.constant 0 : index
    %c0_22 = arith.constant 0 : index
    %c0_23 = arith.constant 0 : index
    %30 = vector.load %arg8[%c0_21, %c0_22, %c0_23] : memref<1x1x128xf32, #tpu.memory_space<vmem>>, vector<1x1x128xf32>
    %31 = vector.shape_cast %30 : vector<1x1x128xf32> to vector<1x128xf32>
    %32 = vector.shape_cast %29 : vector<1x128xf32> to vector<1x1x128xf32>
    tpu.vector_store %arg8[%c0_21, %c0_22, %c0_23], %32 {strides = array<i32>} : memref<1x1x128xf32, #tpu.memory_space<vmem>>, vector<1x1x128xf32>,
    return
  }
  func.func @transform_0(%arg0: i32) -> (i32, i32, i32) {
    %c0_i32 = arith.constant 0 : i32
    %c0_i32_0 = arith.constant 0 : i32
    %c0_i32_1 = arith.constant 0 : i32
    return %arg0, %c0_i32, %c0_i32_0 : i32, i32, i32
  }
  func.func @transform_1(%arg0: i32) -> (i32, i32) {
    %c0_i32 = arith.constant 0 : i32
    %c0_i32_0 = arith.constant 0 : i32
    return %arg0, %c0_i32 : i32, i32
  }
  func.func @transform_2(%arg0: i32) -> (i32, i32) {
    %c0_i32 = arith.constant 0 : i32
    %c0_i32_0 = arith.constant 0 : i32
    %c0_i32_1 = arith.constant 0 : i32
    return %c0_i32, %c0_i32_0 : i32, i32
  }
  func.func @transform_3(%arg0: i32) -> (i32, i32) {
    %c0_i32 = arith.constant 0 : i32
    %c0_i32_0 = arith.constant 0 : i32
    %c0_i32_1 = arith.constant 0 : i32
    return %c0_i32, %c0_i32_0 : i32, i32
  }
  func.func @transform_4(%arg0: i32) -> (i32, i32) {
    %c0_i32 = arith.constant 0 : i32
    %c0_i32_0 = arith.constant 0 : i32
    %c0_i32_1 = arith.constant 0 : i32
    return %c0_i32, %c0_i32_0 : i32, i32
  }
  func.func @transform_5(%arg0: i32) -> (i32, i32) {
    %c0_i32 = arith.constant 0 : i32
    %c0_i32_0 = arith.constant 0 : i32
    %c0_i32_1 = arith.constant 0 : i32
    return %c0_i32, %c0_i32_0 : i32, i32
  }
  func.func @transform_6(%arg0: i32) -> i32 {
    %c0_i32 = arith.constant 0 : i32
    %c0_i32_0 = arith.constant 0 : i32
    return %c0_i32 : i32
  }
  func.func @transform_7(%arg0: i32) -> (i32, i32, i32) {
    %c0_i32 = arith.constant 0 : i32
    %c0_i32_0 = arith.constant 0 : i32
    %c0_i32_1 = arith.constant 0 : i32
    return %arg0, %c0_i32, %c0_i32_0 : i32, i32, i32
  }
}

</mosaic_0001>

<llo_original>
// kernel: tpu_custom_call.1
$region0: #{tpu_custom_call.1}
  #allocation0 [shape = 'u32[]', space=smem, size = 0x4, offset = 0x4, fixed_abs, tag = 'smem constant byte address 0x4 - core index']
  #allocation1 [shape = 'u32[144,128]{1,0:T(1,128)}', space=vmem, size = 0x12000, scoped, tag = 'internal scratch']
  #allocation2 [shape = 'f32[1]{0:T(128)S(6)}', space=smem, size = 0x200, scoped, tag = 'scoped memory for tpu_custom_call.1']
  %s0 = inlined_call_operand.hbm [shape: bf16[2,8,8], index: 0, kind: input, shape index: {}]
  %s1 = inlined_call_operand.hbm [shape: bf16[16,128], index: 1, kind: input, shape index: {}]
  %s2 = inlined_call_operand.hbm [shape: bf16[128,128], index: 2, kind: input, shape index: {}]
  %s3 = inlined_call_operand.vmem [shape: f32[2,128], index: 3, kind: input, shape index: {}]
  %s4 = inlined_call_operand.hbm [shape: bf16[128,128], index: 4, kind: input, shape index: {}]
  %s5 = inlined_call_operand.hbm [shape: bf16[128,128], index: 5, kind: input, shape index: {}]
  %s6 = inlined_call_operand.<no memory space> [shape: f32[1], index: 6, kind: input, shape index: {}]
  %s7 = inlined_call_operand.hbm [shape: f32[2,1,128], index: 7, kind: output, shape index: {}]
  %s8 = sld [smem:[#allocation0]]
  $region81: #{tpu_custom_call.1} parent=0
    _
  %s10 = ssub.s32 1, %s8
  %s11 = scalar_select 0, %s10, %s8
  %12 = sst [smem:[#allocation2]] %s6
  $region1: #{tpu_custom_call.1} parent=0
    #allocation3 [shape = 'u8[4096]{0}', space=vmem, size = 0x1000, scoped, tag = 'input window, operand 0']
    #allocation4 [shape = 's32[2]{0}', space=sflag, size = 0x8, scoped, tag = 'scoped memory for tpu_custom_call.1']
    #allocation5 [shape = 's32[2]{0}', space=sflag, size = 0x8, scoped, tag = 'scoped memory for tpu_custom_call.1']
    #allocation6 [shape = 'u8[4096]{0}', space=vmem, size = 0x1000, scoped, tag = 'input window, operand 1']
    #allocation7 [shape = 's32[2]{0}', space=sflag, size = 0x8, scoped, tag = 'scoped memory for tpu_custom_call.1']
    #allocation8 [shape = 'u8[32768]{0}', space=vmem, size = 0x8000, scoped, tag = 'input window, operand 2, single buffered']
    #allocation9 [shape = 'u8[32768]{0}', space=vmem, size = 0x8000, scoped, tag = 'input window, operand 4, single buffered']
    #allocation10 [shape = 's32[1]{0}', space=sflag, size = 0x4, scoped, tag = 'scoped memory for tpu_custom_call.1']
    #allocation11 [shape = 'u8[32768]{0}', space=vmem, size = 0x8000, scoped, tag = 'input window, operand 5, single buffered']
    #allocation12 [shape = 'u8[1024]{0}', space=vmem, size = 0x400, scoped, tag = 'output window, operand 0']
    %13 = vsyncpa [#allocation4], 0
    %s14 = scalar_lea.sflag [#allocation4], 1
    %15 = vsyncpa %s14, 0
    %16 = vsyncpa [#allocation7], 0
    %s17 = scalar_lea.sflag [#allocation7], 1
    %18 = vsyncpa %s17, 0
    %19 = vsyncpa [#allocation10], 0
    %20 = vsyncpa [#allocation5], 0
    %s21 = scalar_lea.sflag [#allocation5], 1
    %22 = vsyncpa %s21, 0
    loop: start=0, step=1, limit=4
    $region2: #{tpu_custom_call.1} parent=1 // loop_pre_header
      _
    $region3: #{tpu_custom_call.1} parent=1 // loop_header
      %s24 = sphi 0, %s28
      %p25 = scmp.ge.s32.totalorder %s24, 4
      %s34 = sphi 0, %s36
      %s37 = sphi 0, %s34
      %s38 = sphi 0, %s37
      %s54 = sphi 0, %s38
      %s60 = sphi 0, %s62
      %s63 = sphi 0, %s60
      %s64 = sphi 0, %s63
      %s80 = sphi 0, %s64
      %s84 = sphi 0, %s84
      %s86 = sphi 0, %s84
      %s87 = sphi 0, %s86
      %s101 = sphi 0, %s87
      %s105 = sphi 0, %s105
      %s107 = sphi 0, %s105
      %s108 = sphi 0, %s107
      %s122 = sphi 0, %s108
      %s126 = sphi 0, %s126
      %s128 = sphi 0, %s126
      %s129 = sphi 0, %s128
      %s143 = sphi 0, %s129
      %s147 = sphi 0, %s147
      %s149 = sphi 0, %s147
      %s150 = sphi 0, %s149
      %s164 = sphi 0, %s150
      %s168 = sphi 0, %s168
      %s170 = sphi 0, %s168
      %s171 = sphi 0, %s170
      %s185 = sphi 0, %s171
      %s191 = sphi 0, %s193
      %s194 = sphi 0, %s191
      %s195 = sphi 0, %s194
      %s211 = sphi 0, %s195
    $region4: #{tpu_custom_call.1} parent=1 // loop_header_branch
      %27 = sbr.rel (%p25) target = $region8
    $region5: #{tpu_custom_call.1} parent=1 // loop_body
      %s29 = ssub.s32 %s24, 1
      %s30 = ssub.s32 %s24, 2
      %s31 = sadd.s32 %s24, 1
      %s32 = ssub.s32 %s24, %s31
      %p33 = scmp.eq.s32.totalorder %s32, 0
      %s35 = sadd.s32 %s34, 1
      %s36 = scalar_select %p33, %s34, %s35
      %p39 = pneg %p33
      %p40 = scmp.eq.s32.totalorder %s24, 1
      %p41 = por %p39, %p40
      %p42 = scmp.ne.s32.totalorder %s34, %s37
      %p43 = scmp.eq.s32.totalorder %s24, 0
      %p44 = por %p42, %p43
      %p45 = scmp.ne.s32.totalorder %s34, %s37
      %p46 = scmp.eq.s32.totalorder %s29, 1
      %p47 = por %p45, %p46
      %p48 = scmp.ne.s32.totalorder %s37, %s38
      %p49 = scmp.eq.s32.totalorder %s29, 0
      %p50 = por %p48, %p49
      %p51 = scmp.ne.s32.totalorder %s37, %s38
      %p52 = scmp.eq.s32.totalorder %s30, 1
      %p53 = por %p51, %p52
      %p55 = scmp.ne.s32.totalorder %s38, %s54
      %p56 = scmp.eq.s32.totalorder %s30, 0
      %p57 = por %p55, %p56
      %s58 = ssub.s32 %s24, %s31
      %p59 = scmp.eq.s32.totalorder %s58, 0
      %s61 = sadd.s32 %s60, 1
      %s62 = scalar_select %p59, %s60, %s61
      %p65 = pneg %p59
      %p66 = scmp.eq.s32.totalorder %s24, 1
      %p67 = por %p65, %p66
      %p68 = scmp.ne.s32.totalorder %s60, %s63
      %p69 = scmp.eq.s32.totalorder %s24, 0
      %p70 = por %p68, %p69
      %p71 = scmp.ne.s32.totalorder %s60, %s63
      %p72 = scmp.eq.s32.totalorder %s29, 1
      %p73 = por %p71, %p72
      %p74 = scmp.ne.s32.totalorder %s63, %s64
      %p75 = scmp.eq.s32.totalorder %s29, 0
      %p76 = por %p74, %p75
      %p77 = scmp.ne.s32.totalorder %s63, %s64
      %p78 = scmp.eq.s32.totalorder %s30, 1
      %p79 = por %p77, %p78
      %p81 = scmp.ne.s32.totalorder %s64, %s80
      %p82 = scmp.eq.s32.totalorder %s30, 0
      %p83 = por %p81, %p82
      %s85 = sadd.s32 %s84, 1
      %p88 = scmp.eq.s32.totalorder %s24, 1
      %p89 = scmp.ne.s32.totalorder %s84, %s86
      %p90 = scmp.eq.s32.totalorder %s24, 0
      %p91 = por %p89, %p90
      %p92 = scmp.ne.s32.totalorder %s84, %s86
      %p93 = scmp.eq.s32.totalorder %s29, 1
      %p94 = por %p92, %p93
      %p95 = scmp.ne.s32.totalorder %s86, %s87
      %p96 = scmp.eq.s32.totalorder %s29, 0
      %p97 = por %p95, %p96
      %p98 = scmp.ne.s32.totalorder %s86, %s87
      %p99 = scmp.eq.s32.totalorder %s30, 1
      %p100 = por %p98, %p99
      %p102 = scmp.ne.s32.totalorder %s87, %s101
      %p103 = scmp.eq.s32.totalorder %s30, 0
      %p104 = por %p102, %p103
      %s106 = sadd.s32 %s105, 1
      %p109 = scmp.eq.s32.totalorder %s24, 1
      %p110 = scmp.ne.s32.totalorder %s105, %s107
      %p111 = scmp.eq.s32.totalorder %s24, 0
      %p112 = por %p110, %p111
      %p113 = scmp.ne.s32.totalorder %s105, %s107
      %p114 = scmp.eq.s32.totalorder %s29, 1
      %p115 = por %p113, %p114
      %p116 = scmp.ne.s32.totalorder %s107, %s108
      %p117 = scmp.eq.s32.totalorder %s29, 0
      %p118 = por %p116, %p117
      %p119 = scmp.ne.s32.totalorder %s107, %s108
      %p120 = scmp.eq.s32.totalorder %s30, 1
      %p121 = por %p119, %p120
      %p123 = scmp.ne.s32.totalorder %s108, %s122
      %p124 = scmp.eq.s32.totalorder %s30, 0
      %p125 = por %p123, %p124
      %s127 = sadd.s32 %s126, 1
      %p130 = scmp.eq.s32.totalorder %s24, 1
      %p131 = scmp.ne.s32.totalorder %s126, %s128
      %p132 = scmp.eq.s32.totalorder %s24, 0
      %p133 = por %p131, %p132
      %p134 = scmp.ne.s32.totalorder %s126, %s128
      %p135 = scmp.eq.s32.totalorder %s29, 1
      %p136 = por %p134, %p135
      %p137 = scmp.ne.s32.totalorder %s128, %s129
      %p138 = scmp.eq.s32.totalorder %s29, 0
      %p139 = por %p137, %p138
      %p140 = scmp.ne.s32.totalorder %s128, %s129
      %p141 = scmp.eq.s32.totalorder %s30, 1
      %p142 = por %p140, %p141
      %p144 = scmp.ne.s32.totalorder %s129, %s143
      %p145 = scmp.eq.s32.totalorder %s30, 0
      %p146 = por %p144, %p145
      %s148 = sadd.s32 %s147, 1
      %p151 = scmp.eq.s32.totalorder %s24, 1
      %p152 = scmp.ne.s32.totalorder %s147, %s149
      %p153 = scmp.eq.s32.totalorder %s24, 0
      %p154 = por %p152, %p153
      %p155 = scmp.ne.s32.totalorder %s147, %s149
      %p156 = scmp.eq.s32.totalorder %s29, 1
      %p157 = por %p155, %p156
      %p158 = scmp.ne.s32.totalorder %s149, %s150
      %p159 = scmp.eq.s32.totalorder %s29, 0
      %p160 = por %p158, %p159
      %p161 = scmp.ne.s32.totalorder %s149, %s150
      %p162 = scmp.eq.s32.totalorder %s30, 1
      %p163 = por %p161, %p162
      %p165 = scmp.ne.s32.totalorder %s150, %s164
      %p166 = scmp.eq.s32.totalorder %s30, 0
      %p167 = por %p165, %p166
      %s169 = sadd.s32 %s168, 1
      %p172 = scmp.eq.s32.totalorder %s24, 1
      %p173 = scmp.ne.s32.totalorder %s168, %s170
      %p174 = scmp.eq.s32.totalorder %s24, 0
      %p175 = por %p173, %p174
      %p176 = scmp.ne.s32.totalorder %s168, %s170
      %p177 = scmp.eq.s32.totalorder %s29, 1
      %p178 = por %p176, %p177
      %p179 = scmp.ne.s32.totalorder %s170, %s171
      %p180 = scmp.eq.s32.totalorder %s29, 0
      %p181 = por %p179, %p180
      %p182 = scmp.ne.s32.totalorder %s170, %s171
      %p183 = scmp.eq.s32.totalorder %s30, 1
      %p184 = por %p182, %p183
      %p186 = scmp.ne.s32.totalorder %s171, %s185
      %p187 = scmp.eq.s32.totalorder %s30, 0
      %p188 = por %p186, %p187
      %s189 = ssub.s32 %s24, %s31
      %p190 = scmp.eq.s32.totalorder %s189, 0
      %s192 = sadd.s32 %s191, 1
      %s193 = scalar_select %p190, %s191, %s192
      %p196 = pneg %p190
      %p197 = scmp.eq.s32.totalorder %s24, 1
      %p198 = por %p196, %p197
      %p199 = scmp.ne.s32.totalorder %s191, %s194
      %p200 = scmp.eq.s32.totalorder %s24, 0
      %p201 = por %p199, %p200
      %p202 = scmp.ne.s32.totalorder %s191, %s194
      %p203 = scmp.eq.s32.totalorder %s29, 1
      %p204 = por %p202, %p203
      %p205 = scmp.ne.s32.totalorder %s194, %s195
      %p206 = scmp.eq.s32.totalorder %s29, 0
      %p207 = por %p205, %p206
      %p208 = scmp.ne.s32.totalorder %s194, %s195
      %p209 = scmp.eq.s32.totalorder %s30, 1
      %p210 = por %p208, %p209
      %p212 = scmp.ne.s32.totalorder %s195, %s211
      %p213 = scmp.eq.s32.totalorder %s30, 0
      %p214 = por %p212, %p213
      %p215 = scmp.le.s32.totalorder 1, %s24
      %p216 = scmp.lt.s32.totalorder %s24, 3
      %p217 = pnand %p215, %p216
      %p218 = pneg %p217
      // Predicated region
      $region9: #{tpu_custom_call.1} parent=5 // pred_check
        _
      $region10: #{tpu_custom_call.1} parent=5 // pred_check_branch
        %220 = sbr.rel (%p217) target = $region12
      $region11: #{tpu_custom_call.1} parent=5 // pred_region
        %s221 = ssub.s32 %s24, 1
        // Predicated region
        $region13: #{tpu_custom_call.1} parent=11 // pred_check
          %p222 = pneg %p97
        $region14: #{tpu_custom_call.1} parent=11 // pred_check_branch
          %224 = sbr.rel (%p222) target = $region16
        $region15: #{tpu_custom_call.1} parent=11 // pred_region
          %s226 = ssub.s32 1024, 1024
          %227 = vsyncadd [#allocation7], %s226
          %s228 = sshll.u32 [#allocation8], 4
          %s229 = int_to_ptr.vmem [resolvable:$true] %s228
          %234 = dma.hbm_to_vmem [thread:$0]  %s2, 1024, %s229, [#allocation7], 64, 64, 4
        $region16: #{tpu_custom_call.1} parent=11 // pred_fallthru
          _
        // Predicated region
        $region17: #{tpu_custom_call.1} parent=11 // pred_check
          %p235 = pneg %p118
        $region18: #{tpu_custom_call.1} parent=11 // pred_check_branch
          %237 = sbr.rel (%p235) target = $region20
        $region19: #{tpu_custom_call.1} parent=11 // pred_region
          _
        $region20: #{tpu_custom_call.1} parent=11 // pred_fallthru
          _
        // Predicated region
        $region21: #{tpu_custom_call.1} parent=11 // pred_check
          %p238 = pneg %p139
        $region22: #{tpu_custom_call.1} parent=11 // pred_check_branch
          %240 = sbr.rel (%p238) target = $region24
        $region23: #{tpu_custom_call.1} parent=11 // pred_region
          %s242 = ssub.s32 1024, 1024
          %243 = vsyncadd [#allocation10], %s242
          %s244 = sshll.u32 [#allocation9], 4
          %s245 = int_to_ptr.vmem [resolvable:$true] %s244
          %250 = dma.hbm_to_vmem [thread:$0]  %s4, 1024, %s245, [#allocation10], 64, 64, 4
        $region24: #{tpu_custom_call.1} parent=11 // pred_fallthru
          _
        // Predicated region
        $region25: #{tpu_custom_call.1} parent=11 // pred_check
          %p251 = pneg %p160
        $region26: #{tpu_custom_call.1} parent=11 // pred_check_branch
          %253 = sbr.rel (%p251) target = $region28
        $region27: #{tpu_custom_call.1} parent=11 // pred_region
          %s255 = ssub.s32 1024, 1024
          %256 = vsyncadd [#allocation10], %s255
          %s257 = sshll.u32 [#allocation11], 4
          %s258 = int_to_ptr.vmem [resolvable:$true] %s257
          %263 = dma.hbm_to_vmem [thread:$0]  %s5, 1024, %s258, [#allocation10], 64, 64, 4
        $region28: #{tpu_custom_call.1} parent=11 // pred_fallthru
          _
        // Predicated region
        $region29: #{tpu_custom_call.1} parent=11 // pred_check
          %p264 = pneg %p181
        $region30: #{tpu_custom_call.1} parent=11 // pred_check_branch
          %266 = sbr.rel (%p264) target = $region32
        $region31: #{tpu_custom_call.1} parent=11 // pred_region
          _
        $region32: #{tpu_custom_call.1} parent=11 // pred_fallthru
          _
      $region12: #{tpu_custom_call.1} parent=5 // pred_fallthru
        _
      %p267 = scmp.lt.s32.totalorder %s24, 2
      // Predicated region
      $region33: #{tpu_custom_call.1} parent=5 // pred_check
        %p268 = pneg %p267
      $region34: #{tpu_custom_call.1} parent=5 // pred_check_branch
        %270 = sbr.rel (%p268) target = $region36
      $region35: #{tpu_custom_call.1} parent=5 // pred_region
        // Predicated region
        $region37: #{tpu_custom_call.1} parent=35 // pred_check
          %p271 = pneg %p44
        $region38: #{tpu_custom_call.1} parent=35 // pred_check_branch
          %273 = sbr.rel (%p271) target = $region40
        $region39: #{tpu_custom_call.1} parent=35 // pred_region
          %s274 = sand.u32 %s34, 1
          %s275 = scalar_lea.sflag [#allocation4], %s274
          %s276 = sand.u32 %s34, 1
          %s277 = smul.addr %s276, 4
          %s278 = scalar_lea.vmem [#allocation3], %s277
          %s280 = ssub.s32 64, 64
          %281 = vsyncadd %s275, %s280
          %s282 = smul.addr %s24, 64
          %s283 = scalar_lea.hbm %s0, %s282
          %s285 = sshll.u32 %s278, 4
          %s286 = int_to_ptr.vmem [resolvable:$true] %s285
          %288 = dma.hbm_to_vmem [thread:$0]  %s283, 64, %s286, %s275
        $region40: #{tpu_custom_call.1} parent=35 // pred_fallthru
          _
        // Predicated region
        $region41: #{tpu_custom_call.1} parent=35 // pred_check
          %p289 = pneg %p70
        $region42: #{tpu_custom_call.1} parent=35 // pred_check_branch
          %291 = sbr.rel (%p289) target = $region44
        $region43: #{tpu_custom_call.1} parent=35 // pred_region
          %s292 = sand.u32 %s24, 1
          %s293 = scalar_lea.sflag [#allocation7], %s292
          %s294 = sand.u32 %s60, 1
          %s295 = smul.addr %s294, 4
          %s296 = scalar_lea.vmem [#allocation6], %s295
          %s298 = ssub.s32 64, 64
          %299 = vsyncadd %s293, %s298
          %s300 = smul.addr %s24, 64
          %s301 = scalar_lea.hbm %s1, %s300
          %s303 = sshll.u32 %s296, 4
          %s304 = int_to_ptr.vmem [resolvable:$true] %s303
          %306 = dma.hbm_to_vmem [thread:$0]  %s301, 64, %s304, %s293
        $region44: #{tpu_custom_call.1} parent=35 // pred_fallthru
          _
      $region36: #{tpu_custom_call.1} parent=5 // pred_fallthru
        _
      %p307 = scmp.le.s32.totalorder 1, %s24
      %p308 = scmp.lt.s32.totalorder %s24, 3
      %p309 = pnand %p307, %p308
      %p310 = pneg %p309
      // Predicated region
      $region45: #{tpu_custom_call.1} parent=5 // pred_check
        _
      $region46: #{tpu_custom_call.1} parent=5 // pred_check_branch
        %312 = sbr.rel (%p309) target = $region48
      $region47: #{tpu_custom_call.1} parent=5 // pred_region
        %s313 = ssub.s32 %s24, 1
        %s314 = sand.u32 %s37, 1
        %s315 = scalar_lea.sflag [#allocation4], %s314
        %s316 = sand.u32 %s37, 1
        %s317 = smul.addr %s316, 4
        %s318 = scalar_lea.vmem [#allocation3], %s317
        // Predicated region
        $region49: #{tpu_custom_call.1} parent=47 // pred_check
          %p319 = pneg %p50
        $region50: #{tpu_custom_call.1} parent=47 // pred_check_branch
          %321 = sbr.rel (%p319) target = $region52
        $region51: #{tpu_custom_call.1} parent=47 // pred_region
          %322 = dma.done %s315, 64
        $region52: #{tpu_custom_call.1} parent=47 // pred_fallthru
          _
        %s323 = sand.u32 %s29, 1
        %s324 = scalar_lea.sflag [#allocation7], %s323
        %s325 = sand.u32 %s63, 1
        %s326 = smul.addr %s325, 4
        %s327 = scalar_lea.vmem [#allocation6], %s326
        // Predicated region
        $region53: #{tpu_custom_call.1} parent=47 // pred_check
          %p328 = pneg %p76
        $region54: #{tpu_custom_call.1} parent=47 // pred_check_branch
          %330 = sbr.rel (%p328) target = $region56
        $region55: #{tpu_custom_call.1} parent=47 // pred_region
          %331 = dma.done %s324, 64
        $region56: #{tpu_custom_call.1} parent=47 // pred_fallthru
          _
        // Predicated region
        $region57: #{tpu_custom_call.1} parent=47 // pred_check
          %p332 = pneg %p97
        $region58: #{tpu_custom_call.1} parent=47 // pred_check_branch
          %334 = sbr.rel (%p332) target = $region60
        $region59: #{tpu_custom_call.1} parent=47 // pred_region
          %335 = dma.done [#allocation7], 1024
        $region60: #{tpu_custom_call.1} parent=47 // pred_fallthru
          _
        // Predicated region
        $region61: #{tpu_custom_call.1} parent=47 // pred_check
          %p336 = pneg %p139
        $region62: #{tpu_custom_call.1} parent=47 // pred_check_branch
          %338 = sbr.rel (%p336) target = $region64
        $region63: #{tpu_custom_call.1} parent=47 // pred_region
          %339 = dma.done [#allocation10], 1024
        $region64: #{tpu_custom_call.1} parent=47 // pred_fallthru
          _
        // Predicated region
        $region65: #{tpu_custom_call.1} parent=47 // pred_check
          %p340 = pneg %p160
        $region66: #{tpu_custom_call.1} parent=47 // pred_check_branch
          %342 = sbr.rel (%p340) target = $region68
        $region67: #{tpu_custom_call.1} parent=47 // pred_region
          %343 = dma.done [#allocation10], 1024
        $region68: #{tpu_custom_call.1} parent=47 // pred_fallthru
          _
        %s344 = sand.u32 %s37, 1
        %s345 = scalar_lea.sflag [#allocation4], %s344
        %s346 = sand.u32 %s37, 1
        %s347 = smul.addr %s346, 4
        %s348 = scalar_lea.vmem [#allocation3], %s347
        %p349 = pneg %p50
        %p350 = pneg %p47
        %s351 = sand.u32 %s29, 1
        %s352 = scalar_lea.sflag [#allocation7], %s351
        %s353 = sand.u32 %s63, 1
        %s354 = smul.addr %s353, 4
        %s355 = scalar_lea.vmem [#allocation6], %s354
        %p356 = pneg %p76
        %p357 = pneg %p73
        %p358 = pneg %p97
        %p359 = pneg %p94
        %p360 = pneg %p118
        %p361 = pneg %p115
        %p362 = pneg %p139
        %p363 = pneg %p136
        %p364 = pneg %p160
        %p365 = pneg %p157
        %p366 = pneg %p181
        %p367 = pneg %p178
        %p368 = pneg %p207
        %p369 = pneg %p204
        %s370 = sand.u32 %s194, 1
        %s371 = scalar_lea.sflag [#allocation5], %s370
        %s372 = sand.u32 %s194, 1
        %s373 = scalar_lea.vmem [#allocation12], %s372
        %v375 = vld [vmem:[%s318] sm:$0xf]
        %v376 = vld [vmem:[%s327] sm:$0xf]
        %v377 = vld [vmem:[#allocation8] sm:$0xf]
        %v378 = vld [vmem:[#allocation8 + $0x4] sm:$0xf]
        %v379 = vld [vmem:[#allocation8 + $0x8] sm:$0xf]
        %v380 = vld [vmem:[#allocation8 + $0xc] sm:$0xf]
        %v381 = vld [vmem:[#allocation8 + $0x10] sm:$0xf]
        %v382 = vld [vmem:[#allocation8 + $0x14] sm:$0xf]
        %v383 = vld [vmem:[#allocation8 + $0x18] sm:$0xf]
        %v384 = vld [vmem:[#allocation8 + $0x1c] sm:$0xf]
        %v385 = vld [vmem:[#allocation8 + $0x20] sm:$0xf]
        %v386 = vld [vmem:[#allocation8 + $0x24] sm:$0xf]
        %v387 = vld [vmem:[#allocation8 + $0x28] sm:$0xf]
        %v388 = vld [vmem:[#allocation8 + $0x2c] sm:$0xf]
        %v389 = vld [vmem:[#allocation8 + $0x30] sm:$0xf]
        %v390 = vld [vmem:[#allocation8 + $0x34] sm:$0xf]
        %v391 = vld [vmem:[#allocation8 + $0x38] sm:$0xf]
        %v392 = vld [vmem:[#allocation8 + $0x3c] sm:$0xf]
        %v409 = vunpack.c.l.b16 %v377
        %v410 = vunpack.c.l.b16 %v378
        %v411 = vunpack.c.l.b16 %v379
        %v412 = vunpack.c.l.b16 %v380
        %v413 = vunpack.c.l.b16 %v381
        %v414 = vunpack.c.l.b16 %v382
        %v415 = vunpack.c.l.b16 %v383
        %v416 = vunpack.c.l.b16 %v384
        %v417 = vunpack.c.l.b16 %v385
        %v418 = vunpack.c.l.b16 %v386
        %v419 = vunpack.c.l.b16 %v387
        %v420 = vunpack.c.l.b16 %v388
        %v421 = vunpack.c.l.b16 %v389
        %v422 = vunpack.c.l.b16 %v390
        %v423 = vunpack.c.l.b16 %v391
        %v424 = vunpack.c.l.b16 %v392
        %v425 = vpack.c.b16 %v410, %v409
        %v426 = vpack.c.b16 %v412, %v411
        %v427 = vpack.c.b16 %v414, %v413
        %v428 = vpack.c.b16 %v416, %v415
        %v429 = vpack.c.b16 %v418, %v417
        %v430 = vpack.c.b16 %v420, %v419
        %v431 = vpack.c.b16 %v422, %v421
        %v432 = vpack.c.b16 %v424, %v423
        %441 = vmatprep.subr.bf16.mxu0 0
        %442 = vmatpush1.bf16.msra.mxu0 %v425
        %443 = vmatprep.subr.bf16.mxu0 0
        %444 = vmatpush1.bf16.msra.mxu0 %v426
        %445 = vmatprep.subr.bf16.mxu0 0
        %446 = vmatpush1.bf16.msra.mxu0 %v427
        %447 = vmatprep.subr.bf16.mxu0 0
        %448 = vmatpush1.bf16.msra.mxu0 %v428
        %449 = vmatprep.subr.bf16.mxu0 0
        %450 = vmatpush1.bf16.msra.mxu0 %v429
        %451 = vmatprep.subr.bf16.mxu0 0
        %452 = vmatpush1.bf16.msra.mxu0 %v430
        %453 = vmatprep.subr.bf16.mxu0 0
        %454 = vmatpush1.bf16.msra.mxu0 %v431
        %455 = vmatprep.subr.bf16.mxu0 0
        %456 = vmatpush1.bf16.msra.mxu0 %v432
        %457 = vmatprep.subr.bf16.mxu0 0
        %458 = vmatpush1.bf16.msra.mxu0 0
        %459 = vmatprep.subr.bf16.mxu0 0
        %460 = vmatpush1.bf16.msra.mxu0 0
        %461 = vmatprep.subr.bf16.mxu0 0
        %462 = vmatpush1.bf16.msra.mxu0 0
        %463 = vmatprep.subr.bf16.mxu0 0
        %464 = vmatpush1.bf16.msra.mxu0 0
        %465 = vmatprep.subr.bf16.mxu0 0
        %466 = vmatpush1.bf16.msra.mxu0 0
        %467 = vmatprep.subr.bf16.mxu0 0
        %468 = vmatpush1.bf16.msra.mxu0 0
        %469 = vmatprep.subr.bf16.mxu0 0
        %470 = vmatpush1.bf16.msra.mxu0 0
        %471 = vmatprep.subr.bf16.mxu0 0
        %472 = vmatpush1.bf16.msra.mxu0 0
        %473 = vmatprep.mubr.bf16.mxu0 0
        %474 = vmatmul.mubr.bf16.gmra.mrb[0].mxu0 %v376
        %v475 = vpop.f32.mrb[0].mxu0
        %v476 = vadd.f32 0.0, %v475
        %v477 = vpop.f32.mrb[0].mxu0
        %v478 = vpop.f32.mrb[0].mxu0
        %v479 = vpop.f32.mrb[0].mxu0
        %480 = vdwg.mxu0
        %v481 = vpack.c.bf16 %v476, %v476
        %v482 = vld [vmem:[%s3] sm:$0x1]
        %v483 = vlaneseq
        %v484 = vshrl.u32 %v483, 7
        %v485 = vsub.s32 0, %v484
        %v486 = vrot.slane %v482, %v485
        %vm487 = vcmask 64512
        %v489 = vsel %vm487, %v375, 0
        %vm491 = vcmask 1043456
        %v493 = vsel %vm491, %v481, 0
        %495 = vmatprep.subr.bf16.mxu0 0
        %496 = vmatpush1.bf16.msra.mxu0 %v493
        %497 = vmatprep.subr.bf16.mxu0 0
        %498 = vmatpush1.bf16.msra.mxu0 0
        %499 = vmatprep.subr.bf16.mxu0 0
        %500 = vmatpush1.bf16.msra.mxu0 0
        %501 = vmatprep.subr.bf16.mxu0 0
        %502 = vmatpush1.bf16.msra.mxu0 0
        %503 = vmatprep.subr.bf16.mxu0 0
        %504 = vmatpush1.bf16.msra.mxu0 0
        %505 = vmatprep.subr.bf16.mxu0 0
        %506 = vmatpush1.bf16.msra.mxu0 0
        %507 = vmatprep.subr.bf16.mxu0 0
        %508 = vmatpush1.bf16.msra.mxu0 0
        %509 = vmatprep.subr.bf16.mxu0 0
        %510 = vmatpush1.bf16.msra.mxu0 0
        %511 = vmatprep.subr.bf16.mxu0 0
        %512 = vmatpush1.bf16.msra.mxu0 0
        %513 = vmatprep.subr.bf16.mxu0 0
        %514 = vmatpush1.bf16.msra.mxu0 0
        %515 = vmatprep.subr.bf16.mxu0 0
        %516 = vmatpush1.bf16.msra.mxu0 0
        %517 = vmatprep.subr.bf16.mxu0 0
        %518 = vmatpush1.bf16.msra.mxu0 0
        %519 = vmatprep.subr.bf16.mxu0 0
        %520 = vmatpush1.bf16.msra.mxu0 0
        %521 = vmatprep.subr.bf16.mxu0 0
        %522 = vmatpush1.bf16.msra.mxu0 0
        %523 = vmatprep.subr.bf16.mxu0 0
        %524 = vmatpush1.bf16.msra.mxu0 0
        %525 = vmatprep.subr.bf16.mxu0 0
        %526 = vmatpush1.bf16.msra.mxu0 0
        %527 = vmatprep.mubr.bf16.mxu0 0
        %528 = vmatmul.mubr.bf16.gmra.mrb[0].mxu0 %v489
        %v529 = vpop.f32.mrb[0].mxu0
        %v530 = vadd.f32 %v486, %v529
        %v531 = vpop.f32.mrb[0].mxu0
        %v532 = vpop.f32.mrb[0].mxu0
        %v533 = vpop.f32.mrb[0].mxu0
        %534 = vdwg.mxu0
        %v535 = vmax.f32 %v530, 0.0
        %v536 = vpack.c.bf16 %v535, %v535
        %v537 = vld [vmem:[#allocation9] sm:$0xf]
        %v538 = vld [vmem:[#allocation9 + $0x4] sm:$0xf]
        %v539 = vld [vmem:[#allocation9 + $0x8] sm:$0xf]
        %v540 = vld [vmem:[#allocation9 + $0xc] sm:$0xf]
        %v541 = vld [vmem:[#allocation9 + $0x10] sm:$0xf]
        %v542 = vld [vmem:[#allocation9 + $0x14] sm:$0xf]
        %v543 = vld [vmem:[#allocation9 + $0x18] sm:$0xf]
        %v544 = vld [vmem:[#allocation9 + $0x1c] sm:$0xf]
        %v545 = vld [vmem:[#allocation9 + $0x20] sm:$0xf]
        %v546 = vld [vmem:[#allocation9 + $0x24] sm:$0xf]
        %v547 = vld [vmem:[#allocation9 + $0x28] sm:$0xf]
        %v548 = vld [vmem:[#allocation9 + $0x2c] sm:$0xf]
        %v549 = vld [vmem:[#allocation9 + $0x30] sm:$0xf]
        %v550 = vld [vmem:[#allocation9 + $0x34] sm:$0xf]
        %v551 = vld [vmem:[#allocation9 + $0x38] sm:$0xf]
        %v552 = vld [vmem:[#allocation9 + $0x3c] sm:$0xf]
        %v569 = vunpack.c.l.b16 %v537
        %v570 = vunpack.c.l.b16 %v538
        %v571 = vunpack.c.l.b16 %v539
        %v572 = vunpack.c.l.b16 %v540
        %v573 = vunpack.c.l.b16 %v541
        %v574 = vunpack.c.l.b16 %v542
        %v575 = vunpack.c.l.b16 %v543
        %v576 = vunpack.c.l.b16 %v544
        %v577 = vunpack.c.l.b16 %v545
        %v578 = vunpack.c.l.b16 %v546
        %v579 = vunpack.c.l.b16 %v547
        %v580 = vunpack.c.l.b16 %v548
        %v581 = vunpack.c.l.b16 %v549
        %v582 = vunpack.c.l.b16 %v550
        %v583 = vunpack.c.l.b16 %v551
        %v584 = vunpack.c.l.b16 %v552
        %v585 = vpack.c.b16 %v570, %v569
        %v586 = vpack.c.b16 %v572, %v571
        %v587 = vpack.c.b16 %v574, %v573
        %v588 = vpack.c.b16 %v576, %v575
        %v589 = vpack.c.b16 %v578, %v577
        %v590 = vpack.c.b16 %v580, %v579
        %v591 = vpack.c.b16 %v582, %v581
        %v592 = vpack.c.b16 %v584, %v583
        %601 = vmatprep.subr.bf16.mxu0 0
        %602 = vmatpush1.bf16.msra.mxu0 %v585
        %603 = vmatprep.subr.bf16.mxu0 0
        %604 = vmatpush1.bf16.msra.mxu0 %v586
        %605 = vmatprep.subr.bf16.mxu0 0
        %606 = vmatpush1.bf16.msra.mxu0 %v587
        %607 = vmatprep.subr.bf16.mxu0 0
        %608 = vmatpush1.bf16.msra.mxu0 %v588
        %609 = vmatprep.subr.bf16.mxu0 0
        %610 = vmatpush1.bf16.msra.mxu0 %v589
        %611 = vmatprep.subr.bf16.mxu0 0
        %612 = vmatpush1.bf16.msra.mxu0 %v590
        %613 = vmatprep.subr.bf16.mxu0 0
        %614 = vmatpush1.bf16.msra.mxu0 %v591
        %615 = vmatprep.subr.bf16.mxu0 0
        %616 = vmatpush1.bf16.msra.mxu0 %v592
        %617 = vmatprep.subr.bf16.mxu0 0
        %618 = vmatpush1.bf16.msra.mxu0 0
        %619 = vmatprep.subr.bf16.mxu0 0
        %620 = vmatpush1.bf16.msra.mxu0 0
        %621 = vmatprep.subr.bf16.mxu0 0
        %622 = vmatpush1.bf16.msra.mxu0 0
        %623 = vmatprep.subr.bf16.mxu0 0
        %624 = vmatpush1.bf16.msra.mxu0 0
        %625 = vmatprep.subr.bf16.mxu0 0
        %626 = vmatpush1.bf16.msra.mxu0 0
        %627 = vmatprep.subr.bf16.mxu0 0
        %628 = vmatpush1.bf16.msra.mxu0 0
        %629 = vmatprep.subr.bf16.mxu0 0
        %630 = vmatpush1.bf16.msra.mxu0 0
        %631 = vmatprep.subr.bf16.mxu0 0
        %632 = vmatpush1.bf16.msra.mxu0 0
        %633 = vmatprep.mubr.bf16.mxu0 0
        %634 = vmatmul.mubr.bf16.gmra.mrb[0].mxu0 %v536
        %v635 = vpop.f32.mrb[0].mxu0
        %v636 = vadd.f32 0.0, %v635
        %v637 = vpop.f32.mrb[0].mxu0
        %v638 = vpop.f32.mrb[0].mxu0
        %v639 = vpop.f32.mrb[0].mxu0
        %640 = vdwg.mxu0
        %v641 = vpack.c.bf16 %v636, %v636
        %v642 = vld [vmem:[%s3 + $0x1] sm:$0x1]
        %v643 = vlaneseq
        %v644 = vshrl.u32 %v643, 7
        %v645 = vsub.s32 0, %v644
        %v646 = vrot.slane %v642, %v645
        %v648 = vsel %vm491, %v641, 0
        %650 = vmatprep.subr.bf16.mxu0 0
        %651 = vmatpush1.bf16.msra.mxu0 %v648
        %652 = vmatprep.subr.bf16.mxu0 0
        %653 = vmatpush1.bf16.msra.mxu0 0
        %654 = vmatprep.subr.bf16.mxu0 0
        %655 = vmatpush1.bf16.msra.mxu0 0
        %656 = vmatprep.subr.bf16.mxu0 0
        %657 = vmatpush1.bf16.msra.mxu0 0
        %658 = vmatprep.subr.bf16.mxu0 0
        %659 = vmatpush1.bf16.msra.mxu0 0
        %660 = vmatprep.subr.bf16.mxu0 0
        %661 = vmatpush1.bf16.msra.mxu0 0
        %662 = vmatprep.subr.bf16.mxu0 0
        %663 = vmatpush1.bf16.msra.mxu0 0
        %664 = vmatprep.subr.bf16.mxu0 0
        %665 = vmatpush1.bf16.msra.mxu0 0
        %666 = vmatprep.subr.bf16.mxu0 0
        %667 = vmatpush1.bf16.msra.mxu0 0
        %668 = vmatprep.subr.bf16.mxu0 0
        %669 = vmatpush1.bf16.msra.mxu0 0
        %670 = vmatprep.subr.bf16.mxu0 0
        %671 = vmatpush1.bf16.msra.mxu0 0
        %672 = vmatprep.subr.bf16.mxu0 0
        %673 = vmatpush1.bf16.msra.mxu0 0
        %674 = vmatprep.subr.bf16.mxu0 0
        %675 = vmatpush1.bf16.msra.mxu0 0
        %676 = vmatprep.subr.bf16.mxu0 0
        %677 = vmatpush1.bf16.msra.mxu0 0
        %678 = vmatprep.subr.bf16.mxu0 0
        %679 = vmatpush1.bf16.msra.mxu0 0
        %680 = vmatprep.subr.bf16.mxu0 0
        %681 = vmatpush1.bf16.msra.mxu0 0
        %682 = vmatprep.mubr.bf16.mxu0 0
        %683 = vmatmul.mubr.bf16.gmra.mrb[0].mxu0 %v489
        %v684 = vpop.f32.mrb[0].mxu0
        %v685 = vadd.f32 %v646, %v684
        %v686 = vpop.f32.mrb[0].mxu0
        %v687 = vpop.f32.mrb[0].mxu0
        %v688 = vpop.f32.mrb[0].mxu0
        %689 = vdwg.mxu0
        %v690 = vrot.slane %v685, 4
        %v691 = vadd.f32 %v685, %v690
        %v692 = vrot.slane %v691, 2
        %v693 = vadd.f32 %v691, %v692
        %v694 = vrot.slane %v693, 1
        %v695 = vadd.f32 %v693, %v694
        %v696 = vrcp.pop 8.0
        %v697 = vmul.f32 %v695, %v696
        %v698 = vpack.c.bf16 %v697, %v697
        %v699 = vld [vmem:[#allocation11] sm:$0xf]
        %v700 = vld [vmem:[#allocation11 + $0x4] sm:$0xf]
        %v701 = vld [vmem:[#allocation11 + $0x8] sm:$0xf]
        %v702 = vld [vmem:[#allocation11 + $0xc] sm:$0xf]
        %v703 = vld [vmem:[#allocation11 + $0x10] sm:$0xf]
        %v704 = vld [vmem:[#allocation11 + $0x14] sm:$0xf]
        %v705 = vld [vmem:[#allocation11 + $0x18] sm:$0xf]
        %v706 = vld [vmem:[#allocation11 + $0x1c] sm:$0xf]
        %v707 = vld [vmem:[#allocation11 + $0x20] sm:$0xf]
        %v708 = vld [vmem:[#allocation11 + $0x24] sm:$0xf]
        %v709 = vld [vmem:[#allocation11 + $0x28] sm:$0xf]
        %v710 = vld [vmem:[#allocation11 + $0x2c] sm:$0xf]
        %v711 = vld [vmem:[#allocation11 + $0x30] sm:$0xf]
        %v712 = vld [vmem:[#allocation11 + $0x34] sm:$0xf]
        %v713 = vld [vmem:[#allocation11 + $0x38] sm:$0xf]
        %v714 = vld [vmem:[#allocation11 + $0x3c] sm:$0xf]
        %s715 = sld [smem:[#allocation2]]
        %v716 = vstv %s715
        %v733 = vunpack.c.l.b16 %v699
        %v734 = vunpack.c.l.b16 %v700
        %v735 = vunpack.c.l.b16 %v701
        %v736 = vunpack.c.l.b16 %v702
        %v737 = vunpack.c.l.b16 %v703
        %v738 = vunpack.c.l.b16 %v704
        %v739 = vunpack.c.l.b16 %v705
        %v740 = vunpack.c.l.b16 %v706
        %v741 = vunpack.c.l.b16 %v707
        %v742 = vunpack.c.l.b16 %v708
        %v743 = vunpack.c.l.b16 %v709
        %v744 = vunpack.c.l.b16 %v710
        %v745 = vunpack.c.l.b16 %v711
        %v746 = vunpack.c.l.b16 %v712
        %v747 = vunpack.c.l.b16 %v713
        %v748 = vunpack.c.l.b16 %v714
        %v749 = vpack.c.b16 %v734, %v733
        %v750 = vpack.c.b16 %v736, %v735
        %v751 = vpack.c.b16 %v738, %v737
        %v752 = vpack.c.b16 %v740, %v739
        %v753 = vpack.c.b16 %v742, %v741
        %v754 = vpack.c.b16 %v744, %v743
        %v755 = vpack.c.b16 %v746, %v745
        %v756 = vpack.c.b16 %v748, %v747
        %765 = vmatprep.subr.bf16.mxu0 0
        %766 = vmatpush1.bf16.msra.mxu0 %v749
        %767 = vmatprep.subr.bf16.mxu0 0
        %768 = vmatpush1.bf16.msra.mxu0 %v750
        %769 = vmatprep.subr.bf16.mxu0 0
        %770 = vmatpush1.bf16.msra.mxu0 %v751
        %771 = vmatprep.subr.bf16.mxu0 0
        %772 = vmatpush1.bf16.msra.mxu0 %v752
        %773 = vmatprep.subr.bf16.mxu0 0
        %774 = vmatpush1.bf16.msra.mxu0 %v753
        %775 = vmatprep.subr.bf16.mxu0 0
        %776 = vmatpush1.bf16.msra.mxu0 %v754
        %777 = vmatprep.subr.bf16.mxu0 0
        %778 = vmatpush1.bf16.msra.mxu0 %v755
        %779 = vmatprep.subr.bf16.mxu0 0
        %780 = vmatpush1.bf16.msra.mxu0 %v756
        %781 = vmatprep.subr.bf16.mxu0 0
        %782 = vmatpush1.bf16.msra.mxu0 0
        %783 = vmatprep.subr.bf16.mxu0 0
        %784 = vmatpush1.bf16.msra.mxu0 0
        %785 = vmatprep.subr.bf16.mxu0 0
        %786 = vmatpush1.bf16.msra.mxu0 0
        %787 = vmatprep.subr.bf16.mxu0 0
        %788 = vmatpush1.bf16.msra.mxu0 0
        %789 = vmatprep.subr.bf16.mxu0 0
        %790 = vmatpush1.bf16.msra.mxu0 0
        %791 = vmatprep.subr.bf16.mxu0 0
        %792 = vmatpush1.bf16.msra.mxu0 0
        %793 = vmatprep.subr.bf16.mxu0 0
        %794 = vmatpush1.bf16.msra.mxu0 0
        %795 = vmatprep.subr.bf16.mxu0 0
        %796 = vmatpush1.bf16.msra.mxu0 0
        %797 = vmatprep.mubr.bf16.mxu0 0
        %798 = vmatmul.mubr.bf16.gmra.mrb[0].mxu0 %v698
        %v799 = vpop.f32.mrb[0].mxu0
        %v800 = vadd.f32 %v716, %v799
        %v801 = vpop.f32.mrb[0].mxu0
        %v802 = vpop.f32.mrb[0].mxu0
        %v803 = vpop.f32.mrb[0].mxu0
        %804 = vdwg.mxu0
        %805 = vst [vmem:[%s373] sm:$0x1] %v800
        %s806 = sand.u32 %s194, 1
        %s807 = scalar_lea.sflag [#allocation5], %s806
        %s808 = sand.u32 %s194, 1
        %s809 = scalar_lea.vmem [#allocation12], %s808
        // Predicated region
        $region69: #{tpu_custom_call.1} parent=47 // pred_check
          %p810 = pneg %p204
        $region70: #{tpu_custom_call.1} parent=47 // pred_check_branch
          %812 = sbr.rel (%p810) target = $region72
        $region71: #{tpu_custom_call.1} parent=47 // pred_region
          %s814 = ssub.s32 16, 16
          %815 = vsyncadd %s807, %s814
          %s816 = smul.addr %s29, 16
          %s817 = scalar_lea.hbm %s7, %s816
          %s819 = sshll.u32 %s809, 4
          %s820 = int_to_ptr.vmem [resolvable:$true] %s819
          %822 = dma.vmem_to_hbm [thread:$0]  %s820, 16, %s817, %s807
        $region72: #{tpu_custom_call.1} parent=47 // pred_fallthru
          _
      $region48: #{tpu_custom_call.1} parent=5 // pred_fallthru
        _
      %p823 = scmp.le.s32.totalorder 2, %s24
      // Predicated region
      $region73: #{tpu_custom_call.1} parent=5 // pred_check
        %p824 = pneg %p823
      $region74: #{tpu_custom_call.1} parent=5 // pred_check_branch
        %826 = sbr.rel (%p824) target = $region76
      $region75: #{tpu_custom_call.1} parent=5 // pred_region
        %s827 = ssub.s32 %s24, 2
        // Predicated region
        $region77: #{tpu_custom_call.1} parent=75 // pred_check
          %p828 = pneg %p210
        $region78: #{tpu_custom_call.1} parent=75 // pred_check_branch
          %830 = sbr.rel (%p828) target = $region80
        $region79: #{tpu_custom_call.1} parent=75 // pred_region
          %s831 = sand.u32 %s195, 1
          %s832 = scalar_lea.sflag [#allocation5], %s831
          %s833 = sand.u32 %s195, 1
          %s834 = scalar_lea.vmem [#allocation12], %s833
          %835 = dma.done %s832, 16
        $region80: #{tpu_custom_call.1} parent=75 // pred_fallthru
          _
      $region76: #{tpu_custom_call.1} parent=5 // pred_fallthru
        _
    $region6: #{tpu_custom_call.1} parent=1 // loop_footer
      %s28 = sadd.s32 1, %s24
    $region7: #{tpu_custom_call.1} parent=1 // loop_footer_branch
      %23 = sbr.rel target = $region3
    $region8: #{tpu_custom_call.1} parent=1 // loop_exit
      _
    %836 = vsyncpa [#allocation4], 1
    %s837 = scalar_lea.sflag [#allocation4], 1
    %838 = vsyncpa %s837, 1
    %839 = vsyncpa [#allocation7], 1
    %s840 = scalar_lea.sflag [#allocation7], 1
    %841 = vsyncpa %s840, 1
    %842 = vsyncpa [#allocation10], 1
    %843 = vsyncpa [#allocation5], 1
    %s844 = scalar_lea.sflag [#allocation5], 1
    %845 = vsyncpa %s844, 1

</llo_original>
